<compile_context>
chip_gen: v6e
topology: v6e:2x2x1
jax: 0.10.0
libtpu: 0.0.40
codegen_flags: <defaults>
</compile_context>

<pallas_src>
import functools

import jax
import jax.numpy as jnp
from jax.experimental import pallas as pl
from jax.experimental.pallas import tpu as pltpu


def _proxy_anchor_kernel(x_ref, p_ref, lab_ref, out_ref, *,
                         mrg, alpha, loss_weight, nb_classes):
    x = x_ref[...]                    # (N, D)       float32
    p = p_ref[...]                    # (C_pad, D)   float32, zero-padded rows
    labels = lab_ref[...]             # (N, 1)       int32

    # --- fold L2 normalization (and alpha) into a post-matmul rescale -------
    # matches torch.nn.functional.normalize(eps=1e-12): x / max(|x|, eps)
    eps2 = 1e-24                      # eps**2, safe in fp32 (min normal ~1e-38)
    inv_x = alpha * jax.lax.rsqrt(
        jnp.maximum(jnp.sum(x * x, axis=-1, keepdims=True), eps2))   # (N, 1)

    # Per-proxy squared norms as a (1, C_pad) lane vector via an MXU reduce
    # (ones(1,D) @ (p*p)^T) -- avoids a cross-lane transpose of (C_pad, 1).
    ones_row = jnp.ones((1, x.shape[1]), jnp.float32)
    p_sq_sum = jax.lax.dot_general(
        ones_row, p * p, (((1,), (1,)), ((), ())),
        preferred_element_type=jnp.float32)                          # (1, C_pad)
    inv_p = jax.lax.rsqrt(jnp.maximum(p_sq_sum, eps2))               # (1, C_pad)

    # s = alpha * cos; contraction is X @ P^T with the transposed RHS fed to
    # the MXU directly (trans_b) -- no in-kernel or wrapper-side transpose.
    cos_raw = jax.lax.dot_general(
        x, p, (((1,), (1,)), ((), ())),
        preferred_element_type=jnp.float32)                          # (N, C_pad)
    s = cos_raw * inv_x * inv_p                                      # alpha*cos

    # --- one-hot / valid-class masks ----------------------------------------
    class_ids = jax.lax.broadcasted_iota(jnp.int32, s.shape, 1)      # (N, C_pad)
    p_one_hot = (labels == class_ids).astype(jnp.float32)            # (N, C_pad)

    col_ids = jax.lax.broadcasted_iota(jnp.int32, (1, s.shape[1]), 1)
    valid = (col_ids < (nb_classes + 1)).astype(jnp.float32)         # (1, C_pad)

    # --- masked batch reductions (mask-multiply, no compare+select) ---------
    am = alpha * mrg                  # compile-time constant
    pos_exp = jnp.exp(am - s)         # == exp(-alpha*(cos - mrg))
    neg_exp = jnp.exp(s + am)         # == exp( alpha*(cos + mrg))

    p_sim_sum = jnp.sum(p_one_hot * pos_exp, axis=0, keepdims=True)            # (1, C_pad)
    # (1 - P_one_hot) restricted to real classes == valid - P_one_hot
    n_sim_sum = jnp.sum((valid - p_one_hot) * neg_exp, axis=0, keepdims=True)  # (1, C_pad)

    # number of proxies with at least one positive sample (pad cols are 0)
    num_valid = jnp.sum(
        (jnp.sum(p_one_hot, axis=0, keepdims=True) > 0.0).astype(jnp.float32))

    # padded columns contribute log(1 + 0) = 0 to both sums
    pos_term = jnp.sum(jnp.log(1.0 + p_sim_sum)) / num_valid
    neg_term = jnp.sum(jnp.log(1.0 + n_sim_sum)) * (1.0 / float(nb_classes))

    out_ref[0, 0] = loss_weight * (pos_term + neg_term)


def supcon_proxy_anchor_loss(X, labels, proxies, *,
                             mrg=0.0, alpha=32.0, loss_weight=0.5,
                             nb_classes=37):
    """Pallas TPU implementation of SupConProxyAnchorLoss.forward."""
    assert X.shape[0] == labels.shape[0]
    N, D = X.shape
    c_total = proxies.shape[0]                      # nb_classes + 1
    assert proxies.shape[1] == D

    # Single jnp.pad along the class axis to a lane-dense multiple of 128;
    # padded rows are zero and are excluded inside the kernel via `valid`.
    c_pad = ((c_total + 127) // 128) * 128
    p_padded = jnp.pad(proxies.astype(jnp.float32),
                       ((0, c_pad - c_total), (0, 0)))

    labels2d = labels.reshape(-1, 1).astype(jnp.int32)

    kernel = functools.partial(
        _proxy_anchor_kernel,
        mrg=float(mrg), alpha=float(alpha),
        loss_weight=float(loss_weight), nb_classes=int(nb_classes))

    cost = pl.CostEstimate(
        flops=2 * N * D * c_pad + 2 * D * c_pad,    # cos matmul + norm reduce
        transcendentals=2 * N * c_pad,              # pos_exp + neg_exp
        bytes_accessed=(N * D + c_pad * D + N) * 4)

    out = pl.pallas_call(
        kernel,
        out_shape=jax.ShapeDtypeStruct((1, 1), jnp.float32),
        in_specs=[
            pl.BlockSpec(memory_space=pltpu.MemorySpace.VMEM),   # X
            pl.BlockSpec(memory_space=pltpu.MemorySpace.VMEM),   # proxies (padded)
            pl.BlockSpec(memory_space=pltpu.MemorySpace.VMEM),   # labels
        ],
        out_specs=pl.BlockSpec(memory_space=pltpu.MemorySpace.SMEM),
        cost_estimate=cost,
    )(X.astype(jnp.float32), p_padded, labels2d)
    return out[0, 0]


def _reference_loss(X, labels, proxies, *, mrg, alpha, loss_weight, nb_classes):
    """Pure-JAX reference mirroring the PyTorch forward, for verification."""
    labels = labels.reshape(-1, 1)
    eps = 1e-12
    Pn = proxies / jnp.maximum(
        jnp.linalg.norm(proxies, axis=-1, keepdims=True), eps)
    Xn = X / jnp.maximum(jnp.linalg.norm(X, axis=-1, keepdims=True), eps)
    cos = Xn @ Pn.T
    class_label = jnp.arange(0, nb_classes + 1)
    P_one_hot = (labels == class_label[None, :]).astype(jnp.float32)
    N_one_hot = 1.0 - P_one_hot
    pos_exp = jnp.exp(-alpha * (cos - mrg))
    neg_exp = jnp.exp(alpha * (cos + mrg))
    num_valid = jnp.sum((P_one_hot.sum(axis=0) != 0).astype(jnp.float32))
    P_sim_sum = jnp.where(P_one_hot == 1.0, pos_exp, 0.0).sum(axis=0)
    N_sim_sum = jnp.where(N_one_hot == 1.0, neg_exp, 0.0).sum(axis=0)
    pos_term = jnp.sum(jnp.log(1.0 + P_sim_sum)) / num_valid
    neg_term = jnp.sum(jnp.log(1.0 + N_sim_sum)) / nb_classes
    return loss_weight * (pos_term + neg_term)


if __name__ == "__main__":
    # Module hyper-parameters (small embedding dim for a quick run).
    nb_classes = 37          # class_num
    sz_embed = 128           # size_contrast (kept small)
    mrg = 0.0
    alpha = 32.0
    loss_weight = 0.5

    N = 16                   # batch of RoI features

    key = jax.random.PRNGKey(0)
    k_proxy, k_x, k_lab = jax.random.split(key, 3)

    # proxies: (nb_classes + 1, sz_embed), kaiming_normal_ with mode='fan_out'
    # -> std = sqrt(2 / fan_out) = sqrt(2 / (nb_classes + 1))
    proxies = jax.random.normal(k_proxy, (nb_classes + 1, sz_embed),
                                jnp.float32) * jnp.sqrt(2.0 / (nb_classes + 1))

    X = jax.random.normal(k_x, (N, sz_embed), jnp.float32)
    labels = jax.random.randint(k_lab, (N,), 0, nb_classes + 1, jnp.int32)

    loss = supcon_proxy_anchor_loss(
        X, labels, proxies,
        mrg=mrg, alpha=alpha, loss_weight=loss_weight, nb_classes=nb_classes)
    loss = jax.block_until_ready(loss)

    ref = _reference_loss(
        X, labels, proxies,
        mrg=mrg, alpha=alpha, loss_weight=loss_weight, nb_classes=nb_classes)
    ref = jax.block_until_ready(ref)

    # exp(alpha*cos) amplifies cos rounding by ~alpha, so allow a slightly
    # looser (but still tight) tolerance than pure elementwise parity.
    assert jnp.allclose(loss, ref, rtol=5e-4, atol=5e-4), (loss, ref)
    print("KERNEL_OK")
</pallas_src>

<mosaic_0001>
module attributes {stable_mosaic.version = 11 : i64} {
  func.func @_proxy_anchor_kernel(%arg0: memref<16x128xf32, #tpu.memory_space<vmem>>, %arg1: memref<128x128xf32, #tpu.memory_space<vmem>>, %arg2: memref<16x1xi32, #tpu.memory_space<vmem>>, %arg3: memref<1x1xf32, #tpu.memory_space<smem>>) attributes {dimension_semantics = [], scalar_prefetch = 0 : i64, scratch_operands = 0 : i64, tpu.core_type = #tpu.core_type<tc>} {
    %c0 = arith.constant 0 : index
    %c0_0 = arith.constant 0 : index
    %0 = vector.load %arg0[%c0, %c0_0] : memref<16x128xf32, #tpu.memory_space<vmem>>, vector<16x128xf32>
    %c0_1 = arith.constant 0 : index
    %c0_2 = arith.constant 0 : index
    %1 = vector.load %arg1[%c0_1, %c0_2] : memref<128x128xf32, #tpu.memory_space<vmem>>, vector<128x128xf32>
    %c0_3 = arith.constant 0 : index
    %c0_4 = arith.constant 0 : index
    %2 = vector.load %arg2[%c0_3, %c0_4] : memref<16x1xi32, #tpu.memory_space<vmem>>, vector<16x1xi32>
    %3 = arith.mulf %0, %0 : vector<16x128xf32>
    %cst = arith.constant dense<0.000000e+00> : vector<16xf32>
    %4 = vector.multi_reduction <add>, %3, %cst [1] : vector<16x128xf32> to vector<16xf32>
    %5 = vector.shape_cast %4 : vector<16xf32> to vector<16x1xf32>
    %cst_5 = arith.constant 1.000000e-24 : f32
    %6 = vector.broadcast %cst_5 : f32 to vector<16x1xf32>
    %7 = arith.maximumf %5, %6 : vector<16x1xf32>
    %8 = math.rsqrt %7 : vector<16x1xf32>
    %cst_6 = arith.constant 3.200000e+01 : f32
    %9 = vector.broadcast %cst_6 : f32 to vector<16x1xf32>
    %10 = arith.mulf %9, %8 : vector<16x1xf32>
    %cst_7 = arith.constant 1.000000e+00 : f32
    %11 = vector.broadcast %cst_7 : f32 to vector<1x128xf32>
    %12 = arith.mulf %1, %1 : vector<128x128xf32>
    %cst_8 = arith.constant dense<0.000000e+00> : vector<1x128xf32>
    %13 = tpu.matmul %11, %12, %cst_8 {dimension_numbers = #tpu.dot_dimension_numbers<[1], [1], [0], [0], [0, 0, 1, 0], [], []>} : vector<1x128xf32>, vector<128x128xf32>, vector<1x128xf32> -> vector<1x128xf32>
    %cst_9 = arith.constant 1.000000e-24 : f32
    %14 = vector.broadcast %cst_9 : f32 to vector<1x128xf32>
    %15 = arith.maximumf %13, %14 : vector<1x128xf32>
    %16 = math.rsqrt %15 : vector<1x128xf32>
    %cst_10 = arith.constant dense<0.000000e+00> : vector<16x128xf32>
    %17 = tpu.matmul %0, %1, %cst_10 {dimension_numbers = #tpu.dot_dimension_numbers<[1], [1], [0], [0], [0, 0, 1, 0], [], []>} : vector<16x128xf32>, vector<128x128xf32>, vector<16x128xf32> -> vector<16x128xf32>
    %18 = vector.broadcast %10 : vector<16x1xf32> to vector<16x128xf32>
    %19 = arith.mulf %17, %18 : vector<16x128xf32>
    %20 = vector.broadcast %16 : vector<1x128xf32> to vector<16x128xf32>
    %21 = arith.mulf %19, %20 : vector<16x128xf32>
    %22 = tpu.iota {dimensions = array<i32: 1>} : vector<16x128xi32>
    %23 = vector.broadcast %2 : vector<16x1xi32> to vector<16x128xi32>
    %24 = arith.cmpi eq, %23, %22 : vector<16x128xi32>
    %25 = arith.extui %24 : vector<16x128xi1> to vector<16x128xi32>
    %26 = arith.sitofp %25 : vector<16x128xi32> to vector<16x128xf32>
    %27 = tpu.iota {dimensions = array<i32: 1>} : vector<1x128xi32>
    %c38_i32 = arith.constant 38 : i32
    %28 = vector.broadcast %c38_i32 : i32 to vector<1x128xi32>
    %29 = arith.cmpi slt, %27, %28 : vector<1x128xi32>
    %30 = arith.extui %29 : vector<1x128xi1> to vector<1x128xi32>
    %31 = arith.sitofp %30 : vector<1x128xi32> to vector<1x128xf32>
    %cst_11 = arith.constant 0.000000e+00 : f32
    %32 = vector.broadcast %cst_11 : f32 to vector<16x128xf32>
    %33 = arith.subf %32, %21 : vector<16x128xf32>
    %34 = math.exp %33 : vector<16x128xf32>
    %cst_12 = arith.constant 0.000000e+00 : f32
    %35 = vector.broadcast %cst_12 : f32 to vector<16x128xf32>
    %36 = arith.addf %21, %35 : vector<16x128xf32>
    %37 = math.exp %36 : vector<16x128xf32>
    %38 = arith.mulf %26, %34 : vector<16x128xf32>
    %cst_13 = arith.constant dense<0.000000e+00> : vector<128xf32>
    %39 = vector.multi_reduction <add>, %38, %cst_13 [0] : vector<16x128xf32> to vector<128xf32>
    %40 = vector.shape_cast %39 : vector<128xf32> to vector<1x128xf32>
    %41 = vector.broadcast %31 : vector<1x128xf32> to vector<16x128xf32>
    %42 = arith.subf %41, %26 : vector<16x128xf32>
    %43 = arith.mulf %42, %37 : vector<16x128xf32>
    %cst_14 = arith.constant dense<0.000000e+00> : vector<128xf32>
    %44 = vector.multi_reduction <add>, %43, %cst_14 [0] : vector<16x128xf32> to vector<128xf32>
    %45 = vector.shape_cast %44 : vector<128xf32> to vector<1x128xf32>
    %cst_15 = arith.constant dense<0.000000e+00> : vector<128xf32>
    %46 = vector.multi_reduction <add>, %26, %cst_15 [0] : vector<16x128xf32> to vector<128xf32>
    %47 = vector.shape_cast %46 : vector<128xf32> to vector<1x128xf32>
    %cst_16 = arith.constant 0.000000e+00 : f32
    %48 = vector.broadcast %cst_16 : f32 to vector<1x128xf32>
    %49 = arith.cmpf ogt, %47, %48 : vector<1x128xf32>
    %50 = arith.extui %49 : vector<1x128xi1> to vector<1x128xi32>
    %51 = arith.sitofp %50 : vector<1x128xi32> to vector<1x128xf32>
    %52 = vector.shape_cast %51 : vector<1x128xf32> to vector<1x1x128xf32>
    %cst_17 = arith.constant dense<0.000000e+00> : vector<1xf32>
    %53 = vector.multi_reduction <add>, %52, %cst_17 [1, 2] : vector<1x1x128xf32> to vector<1xf32>
    %54 = vector.shape_cast %53 : vector<1xf32> to vector<1x1x1xf32>
    %55 = vector.extract %54[0, 0, 0] : f32 from vector<1x1x1xf32>
    %cst_18 = arith.constant 1.000000e+00 : f32
    %56 = vector.broadcast %cst_18 : f32 to vector<1x128xf32>
    %57 = arith.addf %56, %40 : vector<1x128xf32>
    %58 = math.log %57 : vector<1x128xf32>
    %59 = vector.shape_cast %58 : vector<1x128xf32> to vector<1x1x128xf32>
    %cst_19 = arith.constant dense<0.000000e+00> : vector<1xf32>
    %60 = vector.multi_reduction <add>, %59, %cst_19 [1, 2] : vector<1x1x128xf32> to vector<1xf32>
    %61 = vector.shape_cast %60 : vector<1xf32> to vector<1x1x1xf32>
    %62 = vector.extract %61[0, 0, 0] : f32 from vector<1x1x1xf32>
    %63 = arith.divf %62, %55 : f32
    %cst_20 = arith.constant 1.000000e+00 : f32
    %64 = vector.broadcast %cst_20 : f32 to vector<1x128xf32>
    %65 = arith.addf %64, %45 : vector<1x128xf32>
    %66 = math.log %65 : vector<1x128xf32>
    %67 = vector.shape_cast %66 : vector<1x128xf32> to vector<1x1x128xf32>
    %cst_21 = arith.constant dense<0.000000e+00> : vector<1xf32>
    %68 = vector.multi_reduction <add>, %67, %cst_21 [1, 2] : vector<1x1x128xf32> to vector<1xf32>
    %69 = vector.shape_cast %68 : vector<1xf32> to vector<1x1x1xf32>
    %70 = vector.extract %69[0, 0, 0] : f32 from vector<1x1x1xf32>
    %cst_22 = arith.constant 0.0270270277 : f32
    %71 = arith.mulf %70, %cst_22 : f32
    %72 = arith.addf %63, %71 : f32
    %cst_23 = arith.constant 5.000000e-01 : f32
    %73 = arith.mulf %cst_23, %72 : f32
    %c0_24 = arith.constant 0 : index
    %c0_25 = arith.constant 0 : index
    %74 = memref.load %arg3[%c0_24, %c0_25] : memref<1x1xf32, #tpu.memory_space<smem>>
    memref.store %73, %arg3[%c0_24, %c0_25] : memref<1x1xf32, #tpu.memory_space<smem>>
    return
  }
}

</mosaic_0001>

<llo_original>
// kernel: tpu_custom_call.1
$region0: #{tpu_custom_call.1}
  #allocation0 [shape = 'u32[]', space=smem, size = 0x4, offset = 0x4, fixed_abs, tag = 'smem constant byte address 0x4 - core index']
  #allocation1 [shape = 'u32[144,128]{1,0:T(1,128)}', space=vmem, size = 0x12000, scoped, tag = 'internal scratch']
  %s0 = inlined_call_operand.vmem [shape: f32[16,128], index: 0, kind: input, shape index: {}]
  %s1 = inlined_call_operand.hbm [shape: f32[128,128], index: 1, kind: input, shape index: {}]
  %s2 = inlined_call_operand.vmem [shape: s32[16,1], index: 2, kind: input, shape index: {}]
  %s3 = inlined_call_operand.hbm [shape: f32[1,1], index: 3, kind: output, shape index: {}]
  %s4 = sld [smem:[#allocation0]]
  $region26: #{tpu_custom_call.1} parent=0
    _
  %s6 = ssub.s32 1, %s4
  %s7 = scalar_select 0, %s6, %s4
  $region1: #{tpu_custom_call.1} parent=0
    #allocation2 [shape = 'u8[65536]{0}', space=vmem, size = 0x10000, scoped, tag = 'input window, operand 1, single buffered']
    #allocation3 [shape = 's32[1]{0}', space=sflag, size = 0x4, scoped, tag = 'scoped memory for tpu_custom_call.1']
    #allocation4 [shape = 's32[1]{0}', space=sflag, size = 0x4, scoped, tag = 'scoped memory for tpu_custom_call.1']
    #allocation5 [shape = 'u8[512]{0}', space=smem, size = 0x200, scoped, tag = 'output window, operand 0, single buffered']
    %8 = vsyncpa [#allocation3], 0
    %9 = vsyncpa [#allocation4], 0
    // Predicated region
    $region2: #{tpu_custom_call.1} parent=1 // pred_check
      _
    $region3: #{tpu_custom_call.1} parent=1 // pred_check_branch
      %11 = sbr.rel (0) target = $region5
    $region4: #{tpu_custom_call.1} parent=1 // pred_region
      _
    $region5: #{tpu_custom_call.1} parent=1 // pred_fallthru
      _
    // Predicated region
    $region6: #{tpu_custom_call.1} parent=1 // pred_check
      _
    $region7: #{tpu_custom_call.1} parent=1 // pred_check_branch
      %13 = sbr.rel (0) target = $region9
    $region8: #{tpu_custom_call.1} parent=1 // pred_region
      %s15 = ssub.s32 2048, 2048
      %16 = vsyncadd [#allocation3], %s15
      %s17 = sshll.u32 [#allocation2], 4
      %s18 = int_to_ptr.vmem [resolvable:$true] %s17
      %23 = dma.hbm_to_vmem [thread:$0]  %s1, 2048, %s18, [#allocation3], 128, 128, 8
    $region9: #{tpu_custom_call.1} parent=1 // pred_fallthru
      _
    // Predicated region
    $region10: #{tpu_custom_call.1} parent=1 // pred_check
      _
    $region11: #{tpu_custom_call.1} parent=1 // pred_check_branch
      %25 = sbr.rel (0) target = $region13
    $region12: #{tpu_custom_call.1} parent=1 // pred_region
      _
    $region13: #{tpu_custom_call.1} parent=1 // pred_fallthru
      _
    // Predicated region
    $region14: #{tpu_custom_call.1} parent=1 // pred_check
      _
    $region15: #{tpu_custom_call.1} parent=1 // pred_check_branch
      %27 = sbr.rel (0) target = $region17
    $region16: #{tpu_custom_call.1} parent=1 // pred_region
      %28 = dma.done [#allocation3], 2048
    $region17: #{tpu_custom_call.1} parent=1 // pred_fallthru
      _
    %v29 = vld [vmem:[%s0] sm:$0xff]
    %v30 = vld [vmem:[%s0 + $0x8] sm:$0xff]
    %v31 = vld [vmem:[#allocation2] sm:$0xff]
    %v32 = vld [vmem:[#allocation2 + $0x8] sm:$0xff]
    %v33 = vld [vmem:[#allocation2 + $0x10] sm:$0xff]
    %v34 = vld [vmem:[#allocation2 + $0x18] sm:$0xff]
    %v35 = vld [vmem:[#allocation2 + $0x20] sm:$0xff]
    %v36 = vld [vmem:[#allocation2 + $0x28] sm:$0xff]
    %v37 = vld [vmem:[#allocation2 + $0x30] sm:$0xff]
    %v38 = vld [vmem:[#allocation2 + $0x38] sm:$0xff]
    %v39 = vld [vmem:[#allocation2 + $0x40] sm:$0xff]
    %v40 = vld [vmem:[#allocation2 + $0x48] sm:$0xff]
    %v41 = vld [vmem:[#allocation2 + $0x50] sm:$0xff]
    %v42 = vld [vmem:[#allocation2 + $0x58] sm:$0xff]
    %v43 = vld [vmem:[#allocation2 + $0x60] sm:$0xff]
    %v44 = vld [vmem:[#allocation2 + $0x68] sm:$0xff]
    %v45 = vld [vmem:[#allocation2 + $0x70] sm:$0xff]
    %v46 = vld [vmem:[#allocation2 + $0x78] sm:$0xff]
    %v47 = vld [vmem:[%s2] sm:$0xff]
    %v48 = vld [vmem:[%s2 + $0x8] sm:$0xff]
    %v49 = vmul.f32 %v29, %v29
    %v50 = vmul.f32 %v30, %v30
    %51 = vadd.xlane.f32.xlu0 %v49
    %v52 = vpop.xlane.xlu0 %51
    %53 = vadd.xlane.f32.xlu0 %v50
    %v54 = vpop.xlane.xlu0 %53
    %v55 = vmax.f32 %v52, 1e-24
    %v56 = vmax.f32 %v54, 1e-24
    %v57 = vrsqrt.pop %v55
    %v58 = vrsqrt.pop %v56
    %v59 = vmul.f32 %v57, 32.0
    %v60 = vmul.f32 %v58, 32.0
    %v61 = vmul.f32 %v31, %v31
    %v62 = vmul.f32 %v32, %v32
    %v63 = vmul.f32 %v33, %v33
    %v64 = vmul.f32 %v34, %v34
    %v65 = vmul.f32 %v35, %v35
    %v66 = vmul.f32 %v36, %v36
    %v67 = vmul.f32 %v37, %v37
    %v68 = vmul.f32 %v38, %v38
    %v69 = vmul.f32 %v39, %v39
    %v70 = vmul.f32 %v40, %v40
    %v71 = vmul.f32 %v41, %v41
    %v72 = vmul.f32 %v42, %v42
    %v73 = vmul.f32 %v43, %v43
    %v74 = vmul.f32 %v44, %v44
    %v75 = vmul.f32 %v45, %v45
    %v76 = vmul.f32 %v46, %v46
    %77 = vmatprep.subr.mxu0 0.0
    %78 = vmatpush1.xpose.msra.mxu0 %v76
    %79 = vmatprep.subr.mxu0 0.0
    %80 = vmatpush1.xpose.msra.mxu0 %v75
    %81 = vmatprep.subr.mxu0 0.0
    %82 = vmatpush1.xpose.msra.mxu0 %v74
    %83 = vmatprep.subr.mxu0 0.0
    %84 = vmatpush1.xpose.msra.mxu0 %v73
    %85 = vmatprep.subr.mxu0 0.0
    %86 = vmatpush1.xpose.msra.mxu0 %v72
    %87 = vmatprep.subr.mxu0 0.0
    %88 = vmatpush1.xpose.msra.mxu0 %v71
    %89 = vmatprep.subr.mxu0 0.0
    %90 = vmatpush1.xpose.msra.mxu0 %v70
    %91 = vmatprep.subr.mxu0 0.0
    %92 = vmatpush1.xpose.msra.mxu0 %v69
    %93 = vmatprep.subr.mxu0 0.0
    %94 = vmatpush1.xpose.msra.mxu0 %v68
    %95 = vmatprep.subr.mxu0 0.0
    %96 = vmatpush1.xpose.msra.mxu0 %v67
    %97 = vmatprep.subr.mxu0 0.0
    %98 = vmatpush1.xpose.msra.mxu0 %v66
    %99 = vmatprep.subr.mxu0 0.0
    %100 = vmatpush1.xpose.msra.mxu0 %v65
    %101 = vmatprep.subr.mxu0 0.0
    %102 = vmatpush1.xpose.msra.mxu0 %v64
    %103 = vmatprep.subr.mxu0 0.0
    %104 = vmatpush1.xpose.msra.mxu0 %v63
    %105 = vmatprep.subr.mxu0 0.0
    %106 = vmatpush1.xpose.msra.mxu0 %v62
    %107 = vmatprep.subr.mxu0 0.0
    %108 = vmatpush1.xpose.msra.mxu0 %v61
    %109 = vmatprep.subr.mxu0 0.0
    %110 = vmatpush2.xpose.msra.mxu0 0.0
    %111 = vmatprep.subr.mxu0 0.0
    %112 = vmatpush2.xpose.msra.mxu0 0.0
    %113 = vmatprep.subr.mxu0 0.0
    %114 = vmatpush2.xpose.msra.mxu0 0.0
    %115 = vmatprep.subr.mxu0 0.0
    %116 = vmatpush2.xpose.msra.mxu0 0.0
    %117 = vmatprep.subr.mxu0 0.0
    %118 = vmatpush2.xpose.msra.mxu0 0.0
    %119 = vmatprep.subr.mxu0 0.0
    %120 = vmatpush2.xpose.msra.mxu0 0.0
    %121 = vmatprep.subr.mxu0 0.0
    %122 = vmatpush2.xpose.msra.mxu0 0.0
    %123 = vmatprep.subr.mxu0 0.0
    %124 = vmatpush2.xpose.msra.mxu0 0.0
    %125 = vmatprep.subr.mxu0 0.0
    %126 = vmatpush2.xpose.msra.mxu0 0.0
    %127 = vmatprep.subr.mxu0 0.0
    %128 = vmatpush2.xpose.msra.mxu0 0.0
    %129 = vmatprep.subr.mxu0 0.0
    %130 = vmatpush2.xpose.msra.mxu0 0.0
    %131 = vmatprep.subr.mxu0 0.0
    %132 = vmatpush2.xpose.msra.mxu0 0.0
    %133 = vmatprep.subr.mxu0 0.0
    %134 = vmatpush2.xpose.msra.mxu0 0.0
    %135 = vmatprep.subr.mxu0 0.0
    %136 = vmatpush2.xpose.msra.mxu0 0.0
    %137 = vmatprep.subr.mxu0 0.0
    %138 = vmatpush2.xpose.msra.mxu0 0.0
    %139 = vmatprep.subr.mxu0 0.0
    %140 = vmatpush2.xpose.msra.mxu0 0.0
    %141 = vmatprep.mubr.f32.mxu0 0.0
    %142 = vmatmul.mubr.f32.gmra.mxu0 1.0
    %v143 = vpop.f32.mrf.mxu0
    %v144 = vadd.f32 0.0, %v143
    %v145 = vpop.f32.mrf.mxu0
    %146 = vdwg.mxu0
    %v147 = vmax.f32 %v144, 1e-24
    %v148 = vrsqrt.pop %v147
    %149 = vmatprep.subr.mxu0 0.0
    %150 = vmatpush1.xpose.msra.mxu0 %v46
    %151 = vmatprep.subr.mxu0 0.0
    %152 = vmatpush1.xpose.msra.mxu0 %v45
    %153 = vmatprep.subr.mxu0 0.0
    %154 = vmatpush1.xpose.msra.mxu0 %v44
    %155 = vmatprep.subr.mxu0 0.0
    %156 = vmatpush1.xpose.msra.mxu0 %v43
    %157 = vmatprep.subr.mxu0 0.0
    %158 = vmatpush1.xpose.msra.mxu0 %v42
    %159 = vmatprep.subr.mxu0 0.0
    %160 = vmatpush1.xpose.msra.mxu0 %v41
    %161 = vmatprep.subr.mxu0 0.0
    %162 = vmatpush1.xpose.msra.mxu0 %v40
    %163 = vmatprep.subr.mxu0 0.0
    %164 = vmatpush1.xpose.msra.mxu0 %v39
    %165 = vmatprep.subr.mxu0 0.0
    %166 = vmatpush1.xpose.msra.mxu0 %v38
    %167 = vmatprep.subr.mxu0 0.0
    %168 = vmatpush1.xpose.msra.mxu0 %v37
    %169 = vmatprep.subr.mxu0 0.0
    %170 = vmatpush1.xpose.msra.mxu0 %v36
    %171 = vmatprep.subr.mxu0 0.0
    %172 = vmatpush1.xpose.msra.mxu0 %v35
    %173 = vmatprep.subr.mxu0 0.0
    %174 = vmatpush1.xpose.msra.mxu0 %v34
    %175 = vmatprep.subr.mxu0 0.0
    %176 = vmatpush1.xpose.msra.mxu0 %v33
    %177 = vmatprep.subr.mxu0 0.0
    %178 = vmatpush1.xpose.msra.mxu0 %v32
    %179 = vmatprep.subr.mxu0 0.0
    %180 = vmatpush1.xpose.msra.mxu0 %v31
    %181 = vmatprep.subr.mxu0 0.0
    %182 = vmatpush2.xpose.msra.mxu0 0.0
    %183 = vmatprep.subr.mxu0 0.0
    %184 = vmatpush2.xpose.msra.mxu0 0.0
    %185 = vmatprep.subr.mxu0 0.0
    %186 = vmatpush2.xpose.msra.mxu0 0.0
    %187 = vmatprep.subr.mxu0 0.0
    %188 = vmatpush2.xpose.msra.mxu0 0.0
    %189 = vmatprep.subr.mxu0 0.0
    %190 = vmatpush2.xpose.msra.mxu0 0.0
    %191 = vmatprep.subr.mxu0 0.0
    %192 = vmatpush2.xpose.msra.mxu0 0.0
    %193 = vmatprep.subr.mxu0 0.0
    %194 = vmatpush2.xpose.msra.mxu0 0.0
    %195 = vmatprep.subr.mxu0 0.0
    %196 = vmatpush2.xpose.msra.mxu0 0.0
    %197 = vmatprep.subr.mxu0 0.0
    %198 = vmatpush2.xpose.msra.mxu0 0.0
    %199 = vmatprep.subr.mxu0 0.0
    %200 = vmatpush2.xpose.msra.mxu0 0.0
    %201 = vmatprep.subr.mxu0 0.0
    %202 = vmatpush2.xpose.msra.mxu0 0.0
    %203 = vmatprep.subr.mxu0 0.0
    %204 = vmatpush2.xpose.msra.mxu0 0.0
    %205 = vmatprep.subr.mxu0 0.0
    %206 = vmatpush2.xpose.msra.mxu0 0.0
    %207 = vmatprep.subr.mxu0 0.0
    %208 = vmatpush2.xpose.msra.mxu0 0.0
    %209 = vmatprep.subr.mxu0 0.0
    %210 = vmatpush2.xpose.msra.mxu0 0.0
    %211 = vmatprep.subr.mxu0 0.0
    %212 = vmatpush2.xpose.msra.mxu0 0.0
    %213 = vmatprep.mubr.f32.mxu0 0.0
    %214 = vmatmul.mubr.f32.gmra.mxu0 %v29
    %v215 = vpop.f32.mrf.mxu0
    %v216 = vadd.f32 0.0, %v215
    %v217 = vpop.f32.mrf.mxu0
    %218 = vmatprep.mubr.f32.mxu0 0.0
    %219 = vmatmul.mubr.f32.gmra.mxu0 %v30
    %v220 = vpop.f32.mrf.mxu0
    %v221 = vadd.f32 0.0, %v220
    %v222 = vpop.f32.mrf.mxu0
    %223 = vdwg.mxu0
    %v224 = vmul.f32 %v216, %v59
    %v225 = vmul.f32 %v221, %v60
    %v226 = vlaneseq
    %v227 = vshrl.u32 %v226, 7
    %v228 = vsub.s32 0, %v227
    %v229 = vrot.slane %v148, %v228
    %v230 = vmul.f32 %v224, %v229
    %v231 = vmul.f32 %v225, %v229
    %v232 = vlaneseq
    %v233 = vand.u32 %v232, 127
    %234 = vset.pattern.permute.xlu0 0
    %235 = vperm.xlu0 %234, %v47
    %v236 = vpop.permute.xlu0 %235
    %237 = vset.pattern.permute.xlu0 0
    %238 = vperm.xlu0 %237, %v48
    %v239 = vpop.permute.xlu0 %238
    %vm240 = vcmp.eq.s32.totalorder %v236, %v233
    %vm241 = vcmp.eq.s32.totalorder %v239, %v233
    %v242 = vsel %vm240, 1, 0
    %v243 = vsel %vm241, 1, 0
    %v244 = vcvt.s32.f32 %v242
    %v245 = vcvt.s32.f32 %v243
    %vm246 = vcmp.lt.s32.totalorder %v233, 38
    %v247 = vsel %vm246, 1, 0
    %v248 = vcvt.s32.f32 %v247
    %v249 = vsub.f32 0.0, %v230
    %v250 = vsub.f32 0.0, %v231
    %v251 = vmul.f32 %v249, 1.442695
    %v252 = vpow.pop %v251
    %v253 = vmul.f32 %v250, 1.442695
    %v254 = vpow.pop %v253
    %v255 = vadd.f32 %v230, 0.0
    %v256 = vadd.f32 %v231, 0.0
    %v257 = vmul.f32 %v255, 1.442695
    %v258 = vpow.pop %v257
    %v259 = vmul.f32 %v256, 1.442695
    %v260 = vpow.pop %v259
    %v261 = vmul.f32 %v244, %v252
    %v262 = vmul.f32 %v245, %v254
    %v263 = vadd.f32 %v261, %v262
    %v264 = vrot.slane %v263, 4
    %v265 = vadd.f32 %v263, %v264
    %v266 = vrot.slane %v265, 2
    %v267 = vadd.f32 %v265, %v266
    %v268 = vrot.slane %v267, 1
    %v269 = vadd.f32 %v267, %v268
    %v270 = vsub.f32 %v248, %v244
    %v271 = vsub.f32 %v248, %v245
    %v272 = vmul.f32 %v270, %v258
    %v273 = vmul.f32 %v271, %v260
    %v274 = vadd.f32 %v272, %v273
    %v275 = vrot.slane %v274, 4
    %v276 = vadd.f32 %v274, %v275
    %v277 = vrot.slane %v276, 2
    %v278 = vadd.f32 %v276, %v277
    %v279 = vrot.slane %v278, 1
    %v280 = vadd.f32 %v278, %v279
    %v281 = vadd.f32 %v244, %v245
    %v282 = vrot.slane %v281, 4
    %v283 = vadd.f32 %v281, %v282
    %v284 = vrot.slane %v283, 2
    %v285 = vadd.f32 %v283, %v284
    %v286 = vrot.slane %v285, 1
    %v287 = vadd.f32 %v285, %v286
    %vm288 = vcmp.gt.f32.partialorder %v287, 0.0
    %v289 = vsel %vm288, 1, 0
    %v290 = vcvt.s32.f32 %v289
    %vm291 = vcmask 1040384
    %v292 = vsel %vm291, %v290, 0.0
    %293 = vadd.xlane.f32.xlu0 %v292
    %v294 = vpop.xlane.xlu0 %293
    %v295 = vrot.slane %v294, 4
    %v296 = vadd.f32 %v294, %v295
    %v297 = vrot.slane %v296, 2
    %v298 = vadd.f32 %v296, %v297
    %v299 = vrot.slane %v298, 1
    %v300 = vadd.f32 %v298, %v299
    %s301 = vtos %v300
    %v302 = vadd.f32 %v269, 1.0
    %v303 = vlog2.pop %v302
    %v304 = vmul.f32 %v303, 0.6931472
    %v305 = vsel %vm291, %v304, 0.0
    %306 = vadd.xlane.f32.xlu0 %v305
    %v307 = vpop.xlane.xlu0 %306
    %v308 = vrot.slane %v307, 4
    %v309 = vadd.f32 %v307, %v308
    %v310 = vrot.slane %v309, 2
    %v311 = vadd.f32 %v309, %v310
    %v312 = vrot.slane %v311, 1
    %v313 = vadd.f32 %v311, %v312
    %s314 = vtos %v313
    %v315 = vstv %s301
    %v316 = vrcp.pop %v315
    %s317 = vtos %v316
    %s318 = smul.f32 %s314, %s317
    %v319 = vadd.f32 %v280, 1.0
    %v320 = vlog2.pop %v319
    %v321 = vmul.f32 %v320, 0.6931472
    %v322 = vsel %vm291, %v321, 0.0
    %323 = vadd.xlane.f32.xlu0 %v322
    %v324 = vpop.xlane.xlu0 %323
    %v325 = vrot.slane %v324, 4
    %v326 = vadd.f32 %v324, %v325
    %v327 = vrot.slane %v326, 2
    %v328 = vadd.f32 %v326, %v327
    %v329 = vrot.slane %v328, 1
    %v330 = vadd.f32 %v328, %v329
    %s331 = vtos %v330
    %s332 = smul.f32 %s331, 0.027027028
    %s333 = sadd.f32 %s318, %s332
    %s334 = smul.f32 %s333, 0.5
    %s335 = scalar_lea.smem [#allocation5], 0
    %336 = sst [smem:[%s335]] %s334
    // Predicated region
    $region18: #{tpu_custom_call.1} parent=1 // pred_check
      _
    $region19: #{tpu_custom_call.1} parent=1 // pred_check_branch
      %338 = sbr.rel (0) target = $region21
    $region20: #{tpu_custom_call.1} parent=1 // pred_region
      %s340 = ssub.s32 16, 16
      %341 = vsyncadd [#allocation4], %s340
      %344 = dma.smem_to_hbm [#allocation5], 16, %s3, [#allocation4]
    $region21: #{tpu_custom_call.1} parent=1 // pred_fallthru
      _
    // Predicated region
    $region22: #{tpu_custom_call.1} parent=1 // pred_check
      _
    $region23: #{tpu_custom_call.1} parent=1 // pred_check_branch
      %346 = sbr.rel (0) target = $region25
    $region24: #{tpu_custom_call.1} parent=1 // pred_region
      %347 = dma.done [#allocation4], 16
    $region25: #{tpu_custom_call.1} parent=1 // pred_fallthru
      _
    %348 = sfence
    %349 = vsyncpa [#allocation3], 1
    %350 = vsyncpa [#allocation4], 1

</llo_original>
